<compile_context>
chip_gen: v7x
topology: tpu7x:2x2x1
jax: 0.10.0
libtpu: 0.0.40
codegen_flags: <defaults>
</compile_context>

<pallas_src>
import functools

import jax
import jax.numpy as jnp
from jax import lax
from jax.experimental import pallas as pl
from jax.experimental.pallas import tpu as pltpu

_LANE = 128


def _round_up(x, m):
    return ((x + m - 1) // m) * m


def _proxynca_kernel(feat_ref, lab_ref, prox_ref, sqp_ref, out_ref,
                     *, batch, tile_b, gram_dtype):
    # feat_ref: (tile_b, E) native dtype     lab_ref: (tile_b, 1) int32
    # prox_ref: (C, E) gram_dtype, already L2-normalized (hoisted to wrapper)
    # sqp_ref:  (1, C)  f32  == ||normed_proxy||^2 row (hoisted to wrapper)
    # out_ref:  (1, 128) f32 -> per-tile partial sum broadcast across lanes
    i = pl.program_id(0)

    f = feat_ref[...].astype(jnp.float32)                       # (tb, E)
    lab = lab_ref[...]                                          # (tb, 1) int32

    # L2 normalize rows (torch.nn.functional.normalize, eps=1e-12).
    # Reciprocal goes to the EUP slot; reuse the squared row sum for sq_f.
    f_sq = jnp.sum(f * f, axis=1, keepdims=True)                # (tb, 1)
    inv = pl.reciprocal(jnp.maximum(jnp.sqrt(f_sq), 1e-12), approx=False)
    nf = f * inv                                                # (tb, E)
    sq_f = f_sq * (inv * inv)                                   # == ||nf||^2

    # Gram on the MXU: contract the last (lane) dim of BOTH operands -> no
    # transpose. Operands in gram_dtype (bf16 default), f32 accumulation.
    dot = lax.dot_general(nf.astype(gram_dtype), prox_ref[...],
                          (((1,), (1,)), ((), ())),
                          preferred_element_type=jnp.float32)   # (tb, C)

    # Squared pairwise distances with squared=True clamp.
    sd = sq_f - 2.0 * dot + sqp_ref[...]                        # (tb, C)
    sd = jnp.maximum(sd, 0.0)

    # labels_eq: label column vs lane iota over classes (pure VPU compare),
    # fused with jnp.where (no materialized float masks).
    c_iota = lax.broadcasted_iota(jnp.int32, sd.shape, 1)       # (tb, C)
    is_pos = lab == c_iota

    p_dist = jnp.sum(jnp.where(is_pos, sd, 0.0), axis=1, keepdims=True)       # (tb,1)
    n_sum = jnp.sum(jnp.where(is_pos, 0.0, jnp.exp(-sd)), axis=1, keepdims=True)

    # -log(exp(-p) / n_sum) = p + log(n_sum)
    loss_col = p_dist + jnp.log(n_sum)                          # (tb, 1)

    # Mask padded batch rows and fold the per-tile sum in-kernel; write a
    # lane-dense (1, 128) row (unmasked vst, tiny DMA writeback).
    r_iota = lax.broadcasted_iota(jnp.int32, loss_col.shape, 0)
    valid = (i * tile_b + r_iota) < batch
    tile_sum = jnp.sum(jnp.where(valid, loss_col, 0.0), axis=0, keepdims=True)  # (1,1)
    out_ref[...] = jnp.broadcast_to(tile_sum, out_ref.shape)


def proxynca_loss(features, labels, proxies, *, tile_b=256,
                  gram_dtype=jnp.bfloat16):
    """features: (B, E), labels: (B,) int in [0, C), proxies: (C, E) -> scalar.

    gram_dtype=bfloat16 uses the native MXU path on v6e/v7x (recommended);
    pass jnp.float32 for bit-closer parity with the f32 PyTorch module.
    """
    B, E = features.shape
    C, E2 = proxies.shape
    assert E == E2

    # ---- hoisted, once-per-call proxy preparation (constant across tiles) ----
    p32 = proxies.astype(jnp.float32)
    p_norm = jnp.sqrt(jnp.sum(p32 * p32, axis=1, keepdims=True))
    npx = p32 / jnp.maximum(p_norm, 1e-12)                      # (C, E) f32
    sq_p = jnp.sum(npx * npx, axis=1)[None, :]                  # (1, C) f32 (exact)
    npx_g = npx.astype(gram_dtype)                              # MXU operand dtype

    labels2d = labels.reshape(B, 1).astype(jnp.int32)

    # Pad the batch up to a multiple of the tile; padded rows are masked
    # in-kernel (row iota vs B) so the folded per-tile sums stay exact.
    tb = min(tile_b, _round_up(B, 8))
    Bp = _round_up(B, tb)
    if Bp != B:
        pad = Bp - B
        features = jnp.concatenate(
            [features, jnp.ones((pad, E), features.dtype)], axis=0)
        labels2d = jnp.concatenate(
            [labels2d, jnp.zeros((pad, 1), jnp.int32)], axis=0)

    n_tiles = Bp // tb

    # ---- explicit VMEM budget (double-buffered inputs + intermediates) ----
    def _pad2(r, c, itemsize):
        return _round_up(r, 8) * _round_up(c, _LANE) * itemsize

    fb = features.dtype.itemsize
    gb = jnp.dtype(gram_dtype).itemsize
    vmem_est = (2 * _pad2(tb, E, fb)          # features (2 pipeline buffers)
                + 2 * _pad2(tb, 1, 4)         # labels
                + 2 * _pad2(C, E, gb)         # proxies (constant, still 2-buffered)
                + 2 * _pad2(1, C, 4)          # sq_p row
                + 2 * _pad2(1, _LANE, 4)      # output partials
                + 6 * _pad2(tb, C, 4)         # sd / exp / mask intermediates
                + 4 * _pad2(tb, E, 4))        # f, nf, products
    vmem_limit = min(max(vmem_est + (8 << 20), 32 << 20), 64 << 20)

    flops = 2 * Bp * C * E + 6 * Bp * E + 10 * Bp * C
    transcendentals = Bp * C + 3 * Bp
    bytes_accessed = (Bp * E * fb + Bp * 4 + C * E * gb + C * 4
                      + n_tiles * _LANE * 4)

    kernel = functools.partial(_proxynca_kernel, batch=B, tile_b=tb,
                               gram_dtype=gram_dtype)

    partials = pl.pallas_call(
        kernel,
        out_shape=jax.ShapeDtypeStruct((n_tiles, _LANE), jnp.float32),
        grid_spec=pltpu.PrefetchScalarGridSpec(
            num_scalar_prefetch=0,
            grid=(n_tiles,),
            in_specs=[
                pl.BlockSpec((tb, E), lambda i: (i, 0)),    # features tile
                pl.BlockSpec((tb, 1), lambda i: (i, 0)),    # labels tile
                pl.BlockSpec((C, E), lambda i: (0, 0)),     # normed proxies (resident)
                pl.BlockSpec((1, C), lambda i: (0, 0)),     # ||np||^2 row (resident)
            ],
            out_specs=pl.BlockSpec((1, _LANE), lambda i: (i, 0)),
        ),
        compiler_params=pltpu.CompilerParams(
            dimension_semantics=("parallel",),              # disjoint output rows
            vmem_limit_bytes=int(vmem_limit),
        ),
        cost_estimate=pl.CostEstimate(
            flops=int(flops),
            transcendentals=int(transcendentals),
            bytes_accessed=int(bytes_accessed),
        ),
    )(features, labels2d, npx_g, sq_p)

    # Final tiny cross-tile reduction (n_tiles scalars) stays in XLA.
    return jnp.sum(partials[:, 0]) / B


def _reference_proxynca(features, labels, proxies):
    # Pure-JAX f32 mirror of the PyTorch ProxyNCA.forward.
    f = features.astype(jnp.float32)
    p = proxies.astype(jnp.float32)
    nf = f / jnp.maximum(jnp.sqrt(jnp.sum(f * f, axis=1, keepdims=True)), 1e-12)
    npx = p / jnp.maximum(jnp.sqrt(jnp.sum(p * p, axis=1, keepdims=True)), 1e-12)
    sq_f = jnp.sum(nf * nf, axis=1)
    sq_p = jnp.sum(npx * npx, axis=1)
    sd = sq_f[:, None] - 2.0 * (nf @ npx.T) + sq_p[None, :]
    sd = jnp.where(sd < 0.0, 0.0, sd)
    C = p.shape[0]
    eq = labels[:, None] == jnp.arange(C, dtype=labels.dtype)[None, :]
    p_d = jnp.sum(jnp.where(eq, sd, 0.0), axis=1)
    n_sum = jnp.sum(jnp.where(eq, 0.0, jnp.exp(-sd)), axis=1)
    return jnp.mean(p_d + jnp.log(n_sum))


if __name__ == "__main__":
    key = jax.random.PRNGKey(0)
    kf, kl, kp = jax.random.split(key, 3)

    B, E, C = 8, 32, 16     # batchsize, embedding_size, classes_num
    features = jax.random.normal(kf, (B, E), dtype=jnp.float32)
    labels = jax.random.randint(kl, (B,), 0, C, dtype=jnp.int32)
    # xavier_uniform-style proxy init (deterministic stand-in for the module param)
    bound = (6.0 / (C + E)) ** 0.5
    proxies = jax.random.uniform(kp, (C, E), jnp.float32, -bound, bound)

    ref = _reference_proxynca(features, labels, proxies)

    # f32 MXU path: tight check against the f32 reference.
    loss_f32 = proxynca_loss(features, labels, proxies, gram_dtype=jnp.float32)
    jax.block_until_ready(loss_f32)
    assert jnp.allclose(loss_f32, ref, rtol=1e-4, atol=1e-5), (loss_f32, ref)

    # Default bf16 gram (native MXU path on v6e/v7x): looser tolerance.
    loss_bf16 = proxynca_loss(features, labels, proxies)
    jax.block_until_ready(loss_bf16)
    assert jnp.allclose(loss_bf16, ref, rtol=2e-2, atol=2e-2), (loss_bf16, ref)

    # Multi-tile + batch-padding path (exercises in-kernel padded-row masking).
    B2 = 20
    kf2, kl2 = jax.random.split(kf)
    features2 = jax.random.normal(kf2, (B2, E), dtype=jnp.float32)
    labels2 = jax.random.randint(kl2, (B2,), 0, C, dtype=jnp.int32)
    ref2 = _reference_proxynca(features2, labels2, proxies)
    loss2 = proxynca_loss(features2, labels2, proxies, tile_b=8,
                          gram_dtype=jnp.float32)
    jax.block_until_ready(loss2)
    assert jnp.allclose(loss2, ref2, rtol=1e-4, atol=1e-5), (loss2, ref2)

    print("KERNEL_OK")
</pallas_src>

<mosaic_0001>
module attributes {stable_mosaic.version = 11 : i64} {
  func.func @_proxynca_kernel(%arg0: i32, %arg1: memref<8x32xf32, #tpu.memory_space<vmem>>, %arg2: memref<8x1xi32, #tpu.memory_space<vmem>>, %arg3: memref<16x32xf32, #tpu.memory_space<vmem>>, %arg4: memref<1x16xf32, #tpu.memory_space<vmem>>, %arg5: memref<1x128xf32, #tpu.memory_space<vmem>>) attributes {dimension_semantics = [#tpu.dimension_semantics<parallel>], iteration_bounds = array<i64: 1>, scalar_prefetch = 0 : i64, scratch_operands = 0 : i64, tpu.core_type = #tpu.core_type<tc>, window_params = [{transform_indices = @transform_0, window_bounds = array<i64: 8, 32>}, {transform_indices = @transform_1, window_bounds = array<i64: 8, 1>}, {pipeline_mode = #tpu.pipeline_mode<synchronous>, transform_indices = @transform_2, window_bounds = array<i64: 16, 32>}, {pipeline_mode = #tpu.pipeline_mode<synchronous>, transform_indices = @transform_3, window_bounds = array<i64: 1, 16>}, {transform_indices = @transform_4, window_bounds = array<i64: 1, 128>}]} {
    %c0 = arith.constant 0 : index
    %c0_0 = arith.constant 0 : index
    %0 = vector.load %arg1[%c0, %c0_0] : memref<8x32xf32, #tpu.memory_space<vmem>>, vector<8x32xf32>
    %c0_1 = arith.constant 0 : index
    %c0_2 = arith.constant 0 : index
    %1 = vector.load %arg2[%c0_1, %c0_2] : memref<8x1xi32, #tpu.memory_space<vmem>>, vector<8x1xi32>
    %2 = arith.mulf %0, %0 : vector<8x32xf32>
    %cst = arith.constant dense<0.000000e+00> : vector<8xf32>
    %3 = vector.multi_reduction <add>, %2, %cst [1] : vector<8x32xf32> to vector<8xf32>
    %4 = vector.shape_cast %3 : vector<8xf32> to vector<8x1xf32>
    %5 = math.sqrt %4 : vector<8x1xf32>
    %cst_3 = arith.constant 9.99999996E-13 : f32
    %6 = vector.broadcast %cst_3 : f32 to vector<8x1xf32>
    %7 = arith.maximumf %5, %6 : vector<8x1xf32>
    %8 = tpu.reciprocal %7 : vector<8x1xf32> -> vector<8x1xf32>
    %9 = vector.broadcast %8 : vector<8x1xf32> to vector<8x32xf32>
    %10 = arith.mulf %0, %9 : vector<8x32xf32>
    %11 = arith.mulf %8, %8 : vector<8x1xf32>
    %12 = arith.mulf %4, %11 : vector<8x1xf32>
    %c0_4 = arith.constant 0 : index
    %c0_5 = arith.constant 0 : index
    %13 = vector.load %arg3[%c0_4, %c0_5] : memref<16x32xf32, #tpu.memory_space<vmem>>, vector<16x32xf32>
    %cst_6 = arith.constant dense<0.000000e+00> : vector<8x16xf32>
    %14 = tpu.matmul %10, %13, %cst_6 {dimension_numbers = #tpu.dot_dimension_numbers<[1], [1], [0], [0], [0, 0, 1, 0], [], []>} : vector<8x32xf32>, vector<16x32xf32>, vector<8x16xf32> -> vector<8x16xf32>
    %cst_7 = arith.constant 2.000000e+00 : f32
    %15 = vector.broadcast %cst_7 : f32 to vector<8x16xf32>
    %16 = arith.mulf %15, %14 : vector<8x16xf32>
    %17 = vector.broadcast %12 : vector<8x1xf32> to vector<8x16xf32>
    %18 = arith.subf %17, %16 : vector<8x16xf32>
    %c0_8 = arith.constant 0 : index
    %c0_9 = arith.constant 0 : index
    %19 = vector.load %arg4[%c0_8, %c0_9] : memref<1x16xf32, #tpu.memory_space<vmem>>, vector<1x16xf32>
    %20 = vector.broadcast %19 : vector<1x16xf32> to vector<8x16xf32>
    %21 = arith.addf %18, %20 : vector<8x16xf32>
    %cst_10 = arith.constant 0.000000e+00 : f32
    %22 = vector.broadcast %cst_10 : f32 to vector<8x16xf32>
    %23 = arith.maximumf %21, %22 : vector<8x16xf32>
    %24 = tpu.iota {dimensions = array<i32: 1>} : vector<8x16xi32>
    %25 = vector.broadcast %1 : vector<8x1xi32> to vector<8x16xi32>
    %26 = arith.cmpi eq, %25, %24 : vector<8x16xi32>
    %cst_11 = arith.constant 0.000000e+00 : f32
    %27 = vector.broadcast %cst_11 : f32 to vector<8x16xf32>
    %28 = arith.select %26, %23, %27 : vector<8x16xi1>, vector<8x16xf32>
    %cst_12 = arith.constant dense<0.000000e+00> : vector<8xf32>
    %29 = vector.multi_reduction <add>, %28, %cst_12 [1] : vector<8x16xf32> to vector<8xf32>
    %30 = vector.shape_cast %29 : vector<8xf32> to vector<8x1xf32>
    %cst_13 = arith.constant 0.000000e+00 : f32
    %31 = vector.broadcast %cst_13 : f32 to vector<8x16xf32>
    %32 = arith.subf %31, %23 : vector<8x16xf32>
    %33 = math.exp %32 : vector<8x16xf32>
    %cst_14 = arith.constant 0.000000e+00 : f32
    %34 = vector.broadcast %cst_14 : f32 to vector<8x16xf32>
    %35 = arith.select %26, %34, %33 : vector<8x16xi1>, vector<8x16xf32>
    %cst_15 = arith.constant dense<0.000000e+00> : vector<8xf32>
    %36 = vector.multi_reduction <add>, %35, %cst_15 [1] : vector<8x16xf32> to vector<8xf32>
    %37 = vector.shape_cast %36 : vector<8xf32> to vector<8x1xf32>
    %38 = math.log %37 : vector<8x1xf32>
    %39 = arith.addf %30, %38 : vector<8x1xf32>
    %40 = tpu.iota {dimensions = array<i32: 0>} : vector<8x1xi32>
    %c8_i32 = arith.constant 8 : i32
    %41 = arith.muli %arg0, %c8_i32 : i32
    %42 = vector.broadcast %41 : i32 to vector<8x1xi32>
    %43 = arith.addi %42, %40 : vector<8x1xi32>
    %c8_i32_16 = arith.constant 8 : i32
    %44 = vector.broadcast %c8_i32_16 : i32 to vector<8x1xi32>
    %45 = arith.cmpi slt, %43, %44 : vector<8x1xi32>
    %cst_17 = arith.constant 0.000000e+00 : f32
    %46 = vector.broadcast %cst_17 : f32 to vector<8x1xf32>
    %47 = arith.select %45, %39, %46 : vector<8x1xi1>, vector<8x1xf32>
    %cst_18 = arith.constant dense<0.000000e+00> : vector<1xf32>
    %48 = vector.multi_reduction <add>, %47, %cst_18 [0] : vector<8x1xf32> to vector<1xf32>
    %49 = vector.shape_cast %48 : vector<1xf32> to vector<1x1xf32>
    %50 = vector.shape_cast %49 : vector<1x1xf32> to vector<1x1xf32>
    %51 = vector.broadcast %50 : vector<1x1xf32> to vector<1x128xf32>
    %c0_19 = arith.constant 0 : index
    %c0_20 = arith.constant 0 : index
    %52 = vector.load %arg5[%c0_19, %c0_20] : memref<1x128xf32, #tpu.memory_space<vmem>>, vector<1x128xf32>
    tpu.vector_store %arg5[%c0_19, %c0_20], %51 {strides = array<i32>} : memref<1x128xf32, #tpu.memory_space<vmem>>, vector<1x128xf32>,
    return
  }
  func.func @transform_0(%arg0: i32) -> (i32, i32) {
    %c0_i32 = arith.constant 0 : i32
    %c0_i32_0 = arith.constant 0 : i32
    return %arg0, %c0_i32 : i32, i32
  }
  func.func @transform_1(%arg0: i32) -> (i32, i32) {
    %c0_i32 = arith.constant 0 : i32
    %c0_i32_0 = arith.constant 0 : i32
    return %arg0, %c0_i32 : i32, i32
  }
  func.func @transform_2(%arg0: i32) -> (i32, i32) {
    %c0_i32 = arith.constant 0 : i32
    %c0_i32_0 = arith.constant 0 : i32
    %c0_i32_1 = arith.constant 0 : i32
    return %c0_i32, %c0_i32_0 : i32, i32
  }
  func.func @transform_3(%arg0: i32) -> (i32, i32) {
    %c0_i32 = arith.constant 0 : i32
    %c0_i32_0 = arith.constant 0 : i32
    %c0_i32_1 = arith.constant 0 : i32
    return %c0_i32, %c0_i32_0 : i32, i32
  }
  func.func @transform_4(%arg0: i32) -> (i32, i32) {
    %c0_i32 = arith.constant 0 : i32
    %c0_i32_0 = arith.constant 0 : i32
    return %arg0, %c0_i32 : i32, i32
  }
}

</mosaic_0001>

<llo_original>
// kernel: tpu_custom_call.1
$region0: #{tpu_custom_call.1}
  #allocation0 [shape = 'u32[]', space=smem, size = 0x4, offset = 0x4, fixed_abs, tag = 'smem constant byte address 0x4 - core index']
  #allocation1 [shape = 'u32[144,128]{1,0:T(1,128)}', space=vmem, size = 0x12000, scoped, tag = 'internal scratch']
  %s0 = inlined_call_operand.hbm [shape: f32[8,32], index: 0, kind: input, shape index: {}]
  %s1 = inlined_call_operand.vmem [shape: s32[8,1], index: 1, kind: input, shape index: {}]
  %s2 = inlined_call_operand.vmem [shape: f32[16,32], index: 2, kind: input, shape index: {}]
  %s3 = inlined_call_operand.vmem [shape: f32[1,16], index: 3, kind: input, shape index: {}]
  %s4 = inlined_call_operand.hbm [shape: f32[1,128], index: 4, kind: output, shape index: {}]
  %s5 = sld [smem:[#allocation0]]
  $region30: #{tpu_custom_call.1} parent=0
    _
  %s7 = ssub.s32 1, %s5
  %s8 = scalar_select 0, %s7, %s5
  $region1: #{tpu_custom_call.1} parent=0
    #allocation2 [shape = 'u8[4096]{0}', space=vmem, size = 0x1000, scoped, tag = 'input window, operand 0, single buffered']
    #allocation3 [shape = 's32[1]{0}', space=sflag, size = 0x4, scoped, tag = 'scoped memory for tpu_custom_call.1']
    #allocation4 [shape = 's32[1]{0}', space=sflag, size = 0x4, scoped, tag = 'scoped memory for tpu_custom_call.1']
    #allocation5 [shape = 'u8[512]{0}', space=vmem, size = 0x400, scoped, tag = 'output window, operand 0, single buffered']
    %9 = vsyncpa [#allocation3], 0
    %10 = vsyncpa [#allocation4], 0
    // Predicated region
    $region2: #{tpu_custom_call.1} parent=1 // pred_check
      _
    $region3: #{tpu_custom_call.1} parent=1 // pred_check_branch
      %12 = sbr.rel (0) target = $region5
    $region4: #{tpu_custom_call.1} parent=1 // pred_region
      %s14 = ssub.s32 128, 128
      %15 = vsyncadd [#allocation3], %s14
      %s17 = sshll.u32 [#allocation2], 4
      %s18 = int_to_ptr.vmem [resolvable:$true] %s17
      %20 = dma.hbm_to_vmem [thread:$0]  %s0, 128, %s18, [#allocation3]
    $region5: #{tpu_custom_call.1} parent=1 // pred_fallthru
      _
    // Predicated region
    $region6: #{tpu_custom_call.1} parent=1 // pred_check
      _
    $region7: #{tpu_custom_call.1} parent=1 // pred_check_branch
      %22 = sbr.rel (0) target = $region9
    $region8: #{tpu_custom_call.1} parent=1 // pred_region
      _
    $region9: #{tpu_custom_call.1} parent=1 // pred_fallthru
      _
    // Predicated region
    $region10: #{tpu_custom_call.1} parent=1 // pred_check
      _
    $region11: #{tpu_custom_call.1} parent=1 // pred_check_branch
      %24 = sbr.rel (0) target = $region13
    $region12: #{tpu_custom_call.1} parent=1 // pred_region
      _
    $region13: #{tpu_custom_call.1} parent=1 // pred_fallthru
      _
    // Predicated region
    $region14: #{tpu_custom_call.1} parent=1 // pred_check
      _
    $region15: #{tpu_custom_call.1} parent=1 // pred_check_branch
      %26 = sbr.rel (0) target = $region17
    $region16: #{tpu_custom_call.1} parent=1 // pred_region
      _
    $region17: #{tpu_custom_call.1} parent=1 // pred_fallthru
      _
    // Predicated region
    $region18: #{tpu_custom_call.1} parent=1 // pred_check
      _
    $region19: #{tpu_custom_call.1} parent=1 // pred_check_branch
      %28 = sbr.rel (0) target = $region21
    $region20: #{tpu_custom_call.1} parent=1 // pred_region
      %29 = dma.done [#allocation3], 128
    $region21: #{tpu_custom_call.1} parent=1 // pred_fallthru
      _
    %v30 = vld [vmem:[#allocation2] sm:$0xff]
    %v31 = vld [vmem:[%s1] sm:$0xff]
    %v32 = vmul.f32 %v30, %v30
    %vm33 = vcmask 261120
    %v34 = vsel %vm33, %v32, 0.0
    %35 = vadd.xlane.f32.xlu0 %v34
    %v36 = vpop.xlane.xlu0 %35
    %v37 = vrsqrt.pop %v36
    %v38 = vmul.f32 %v36, %v37
    %vm39 = vcmp.eq.f32.partialorder %v36, inf
    %v40 = vsel %vm39, %v36, %v38
    %vm41 = vcmp.eq.f32.partialorder %v36, 0.0
    %v42 = vand.u32 %v36, 2147483648
    %v43 = vsel %vm41, %v42, %v40
    %v44 = vmax.f32 %v43, 1e-12
    %v45 = vrcp.pop %v44
    %v46 = vmul.f32 %v30, %v45
    %v47 = vmul.f32 %v45, %v45
    %v48 = vmul.f32 %v36, %v47
    %v49 = vld [vmem:[%s2] sm:$0xff]
    %v50 = vld [vmem:[%s2 + $0x8] sm:$0xff]
    %v52 = vsel %vm33, %v46, 0
    %v55 = vsel %vm33, %v49, 0
    %v58 = vsel %vm33, %v50, 0
    %60 = vmatprep.subr.mxu0 0.0
    %61 = vmatpush1.xpose.msra.mxu0 %v55
    %62 = vmatprep.subr.mxu0 0.0
    %63 = vmatpush1.xpose.msra.mxu0 %v58
    %64 = vmatprep.subr.mxu0 0.0
    %65 = vmatpush1.xpose.msra.mxu0 0.0
    %66 = vmatprep.subr.mxu0 0.0
    %67 = vmatpush1.xpose.msra.mxu0 0.0
    %68 = vmatprep.subr.mxu0 0.0
    %69 = vmatpush1.xpose.msra.mxu0 0.0
    %70 = vmatprep.subr.mxu0 0.0
    %71 = vmatpush1.xpose.msra.mxu0 0.0
    %72 = vmatprep.subr.mxu0 0.0
    %73 = vmatpush1.xpose.msra.mxu0 0.0
    %74 = vmatprep.subr.mxu0 0.0
    %75 = vmatpush1.xpose.msra.mxu0 0.0
    %76 = vmatprep.subr.mxu0 0.0
    %77 = vmatpush1.xpose.msra.mxu0 0.0
    %78 = vmatprep.subr.mxu0 0.0
    %79 = vmatpush1.xpose.msra.mxu0 0.0
    %80 = vmatprep.subr.mxu0 0.0
    %81 = vmatpush1.xpose.msra.mxu0 0.0
    %82 = vmatprep.subr.mxu0 0.0
    %83 = vmatpush1.xpose.msra.mxu0 0.0
    %84 = vmatprep.subr.mxu0 0.0
    %85 = vmatpush1.xpose.msra.mxu0 0.0
    %86 = vmatprep.subr.mxu0 0.0
    %87 = vmatpush1.xpose.msra.mxu0 0.0
    %88 = vmatprep.subr.mxu0 0.0
    %89 = vmatpush1.xpose.msra.mxu0 0.0
    %90 = vmatprep.subr.mxu0 0.0
    %91 = vmatpush1.xpose.msra.mxu0 0.0
    %92 = vmatprep.subr.mxu0 0.0
    %93 = vmatpush1.xpose.msra.mxu0 0.0
    %94 = vmatprep.subr.mxu0 0.0
    %95 = vmatpush1.xpose.msra.mxu0 0.0
    %96 = vmatprep.subr.mxu0 0.0
    %97 = vmatpush1.xpose.msra.mxu0 0.0
    %98 = vmatprep.subr.mxu0 0.0
    %99 = vmatpush1.xpose.msra.mxu0 0.0
    %100 = vmatprep.subr.mxu0 0.0
    %101 = vmatpush1.xpose.msra.mxu0 0.0
    %102 = vmatprep.subr.mxu0 0.0
    %103 = vmatpush1.xpose.msra.mxu0 0.0
    %104 = vmatprep.subr.mxu0 0.0
    %105 = vmatpush1.xpose.msra.mxu0 0.0
    %106 = vmatprep.subr.mxu0 0.0
    %107 = vmatpush1.xpose.msra.mxu0 0.0
    %108 = vmatprep.subr.mxu0 0.0
    %109 = vmatpush1.xpose.msra.mxu0 0.0
    %110 = vmatprep.subr.mxu0 0.0
    %111 = vmatpush1.xpose.msra.mxu0 0.0
    %112 = vmatprep.subr.mxu0 0.0
    %113 = vmatpush1.xpose.msra.mxu0 0.0
    %114 = vmatprep.subr.mxu0 0.0
    %115 = vmatpush1.xpose.msra.mxu0 0.0
    %116 = vmatprep.subr.mxu0 0.0
    %117 = vmatpush1.xpose.msra.mxu0 0.0
    %118 = vmatprep.subr.mxu0 0.0
    %119 = vmatpush1.xpose.msra.mxu0 0.0
    %120 = vmatprep.subr.mxu0 0.0
    %121 = vmatpush1.xpose.msra.mxu0 0.0
    %122 = vmatprep.subr.mxu0 0.0
    %123 = vmatpush1.xpose.msra.mxu0 0.0
    %124 = vmatprep.mubr.f32.mxu0 0.0
    %125 = vmatmul.mubr.f32.gmra.mrb[0].mxu0 %v52
    %v126 = vpop.f32.mrb[0].mxu0
    %v127 = vadd.f32 0.0, %v126
    %v128 = vpop.f32.mrb[0].mxu0
    %129 = vdwg.mxu0
    %v130 = vmul.f32 %v127, 2.0
    %v131 = vsub.f32 %v48, %v130
    %v132 = vld [vmem:[%s3] sm:$0x1]
    %v134 = vlaneseq
    %v135 = vshrl.u32 %v134, 7
    %v136 = vsub.s32 0, %v135
    %v137 = vrot.slane %v132, %v136
    %v139 = vadd.f32 %v131, %v137
    %v140 = vmax.f32 %v139, 0.0
    %v141 = vlaneseq
    %v142 = vand.u32 %v141, 127
    %143 = vset.pattern.permute.xlu0 0
    %144 = vperm.xlu0 %143, %v31
    %v145 = vpop.permute.xlu0 %144
    %vm146 = vcmp.eq.s32.totalorder %v145, %v142
    %v147 = vsel %vm146, %v140, 0.0
    %vm148 = vcmask 130048
    %v149 = vsel %vm148, %v147, 0.0
    %150 = vadd.xlane.f32.xlu0 %v149
    %v151 = vpop.xlane.xlu0 %150
    %v152 = vsub.f32 0.0, %v140
    %v153 = vmul.f32 %v152, 1.442695
    %v154 = vpow.pop %v153
    %v155 = vsel %vm146, 0.0, %v154
    %v156 = vsel %vm148, %v155, 0.0
    %157 = vadd.xlane.f32.xlu0 %v156
    %v158 = vpop.xlane.xlu0 %157
    %v159 = vlog2.pop %v158
    %v160 = vmul.f32 %v159, 0.6931472
    %v161 = vadd.f32 %v151, %v160
    %v162 = vlaneseq
    %v163 = vshrl.u32 %v162, 7
    %s164 = smul.u32 0, 8
    %v165 = vstv %s164
    %v166 = vadd.s32 %v165, %v163
    %vm167 = vcmp.lt.s32.totalorder %v166, 8
    %v168 = vsel %vm167, %v161, 0.0
    %v169 = vrot.slane %v168, 4
    %v170 = vadd.f32 %v168, %v169
    %v171 = vrot.slane %v170, 2
    %v172 = vadd.f32 %v170, %v171
    %v173 = vrot.slane %v172, 1
    %v174 = vadd.f32 %v172, %v173
    %175 = vst [vmem:[#allocation5] sm:$0x1] %v174
    // Predicated region
    $region22: #{tpu_custom_call.1} parent=1 // pred_check
      _
    $region23: #{tpu_custom_call.1} parent=1 // pred_check_branch
      %177 = sbr.rel (0) target = $region25
    $region24: #{tpu_custom_call.1} parent=1 // pred_region
      %s179 = ssub.s32 16, 16
      %180 = vsyncadd [#allocation4], %s179
      %s182 = sshll.u32 [#allocation5], 4
      %s183 = int_to_ptr.vmem [resolvable:$true] %s182
      %185 = dma.vmem_to_hbm [thread:$0]  %s183, 16, %s4, [#allocation4]
    $region25: #{tpu_custom_call.1} parent=1 // pred_fallthru
      _
    // Predicated region
    $region26: #{tpu_custom_call.1} parent=1 // pred_check
      _
    $region27: #{tpu_custom_call.1} parent=1 // pred_check_branch
      %187 = sbr.rel (0) target = $region29
    $region28: #{tpu_custom_call.1} parent=1 // pred_region
      %188 = dma.done [#allocation4], 16
    $region29: #{tpu_custom_call.1} parent=1 // pred_fallthru
      _
    %189 = vsyncpa [#allocation3], 1
    %190 = vsyncpa [#allocation4], 1

</llo_original>
